<compile_context>
chip_gen: v7x
topology: tpu7x:2x2x1
jax: 0.10.0
libtpu: 0.0.40
codegen_flags: <defaults>
</compile_context>

<pallas_src>
import functools

import jax
import jax.numpy as jnp
import numpy as np
from jax.experimental import pallas as pl
from jax.experimental.pallas import tpu as pltpu

BN_EPS = 1e-5                  # nn.BatchNorm2d default
MXU_DTYPE = jnp.bfloat16       # matmul operand dtype (f32 accumulation)
INTER_DTYPE = jnp.bfloat16     # dtype of y / pooled maps in HBM


# --------------------------------------------------------------------------
# Fused (concat ->) 1x1 conv + folded BN + Swish kernel
# --------------------------------------------------------------------------
def _fused_pw_conv_kernel(*refs, n_feats):
    """refs = (feat_0..feat_{n-1}, w_0..w_{n-1}, bias, out).

    out = swish( sum_i feat_i @ w_i + bias )   (== concat(feats) @ W + b)
    Weights arrive pre-cast to bf16; activations are cast in-kernel only if
    needed.  f32 accumulation + f32 epilogue.
    """
    feat_refs = refs[:n_feats]
    w_refs = refs[n_feats:2 * n_feats]
    b_ref = refs[2 * n_feats]
    o_ref = refs[2 * n_feats + 1]

    acc = None
    for f_ref, w_ref in zip(feat_refs, w_refs):
        f = f_ref[...]
        if f.dtype != MXU_DTYPE:
            f = f.astype(MXU_DTYPE)
        part = jnp.dot(f, w_ref[...], preferred_element_type=jnp.float32)
        acc = part if acc is None else acc + part
    acc = acc + b_ref[...]
    o_ref[...] = (acc * jax.nn.sigmoid(acc)).astype(o_ref.dtype)


def fused_pw_conv_bn_swish(feats, w_fold, b_fold, *, out_dtype=None,
                           tm=256, tn=256):
    """Fused channel-concat of `feats` -> 1x1 conv (BN folded) -> Swish.

    feats:  list of NHWC arrays sharing (N, H, W).
    w_fold: (sum(Cin_i), Cout) folded f32 weight.   b_fold: (Cout,) f32 bias.
    Returns (N, H, W, Cout) in `out_dtype` (default: dtype of feats[0]).
    """
    N, H, W, _ = feats[0].shape
    Cout = w_fold.shape[1]
    M = N * H * W
    out_dtype = np.dtype(out_dtype if out_dtype is not None else feats[0].dtype)

    # --- M tiling: block rows must be 8-divisible or the full dim ------------
    tm = min(tm, M) if M % 8 == 0 else M
    grid_m = pl.cdiv(M, tm)          # a partial tail block is masked by Pallas

    # --- Cout tiling: 256-aligned for v6e/v7x MXU, 128 fallback, else full ---
    if Cout % tn != 0:
        tn = 128 if Cout % 128 == 0 else Cout
    tn = min(tn, Cout)
    grid_n = Cout // tn

    cins = [f.shape[-1] for f in feats]
    flat = [f.reshape(M, c) for f, c in zip(feats, cins)]

    # Split + pre-cast the weight so the channel concat is never materialized
    # and no per-step astype of a grid-constant block happens in-kernel.
    w_slabs, off = [], 0
    for c in cins:
        w_slabs.append(w_fold[off:off + c, :].astype(MXU_DTYPE))
        off += c
    b2 = b_fold.reshape(1, Cout).astype(jnp.float32)

    # Grid = (Cout tiles, M tiles): weight/bias block indices only change on
    # the slow axis, so Pallas skips their re-DMA across the inner M sweep.
    in_specs = (
        [pl.BlockSpec((tm, c), lambda j, i: (i, 0)) for c in cins]
        + [pl.BlockSpec((c, tn), lambda j, i: (0, j)) for c in cins]
        + [pl.BlockSpec((1, tn), lambda j, i: (0, j))]
    )

    k_total = sum(cins)
    feat_bytes = sum(M * c * f.dtype.itemsize for c, f in zip(cins, feats))
    cost = pl.CostEstimate(
        flops=2 * M * k_total * Cout + 4 * M * Cout,
        transcendentals=M * Cout,
        bytes_accessed=(feat_bytes + 2 * k_total * Cout + 4 * Cout
                        + M * Cout * out_dtype.itemsize),
    )

    out = pl.pallas_call(
        functools.partial(_fused_pw_conv_kernel, n_feats=len(feats)),
        out_shape=jax.ShapeDtypeStruct((M, Cout), out_dtype),
        grid=(grid_n, grid_m),
        in_specs=in_specs,
        out_specs=pl.BlockSpec((tm, tn), lambda j, i: (i, j)),
        compiler_params=pltpu.CompilerParams(
            dimension_semantics=("parallel", "parallel"),
            vmem_limit_bytes=32 * 1024 * 1024),
        cost_estimate=cost,
    )(*flat, *w_slabs, b2)
    return out.reshape(N, H, W, Cout)


# --------------------------------------------------------------------------
# Cascaded SPP max-pool kernel: one read of y, three pooled outputs
# --------------------------------------------------------------------------
def _shift_neg_inf(x, d, axis):
    """out[..., i, ...] = x[..., i+d, ...], -inf where i+d is out of range.

    Implemented as an XLU rotate (pltpu.roll) + VPU select so no
    sublane-misaligned slice (forcing a retiling copy) is created.
    """
    size = x.shape[axis]
    rolled = pltpu.roll(x, shift=(-d) % size, axis=axis)
    idx = jax.lax.broadcasted_iota(jnp.int32, x.shape, axis)
    valid = idx < (size - d) if d > 0 else idx >= (-d)
    return jnp.where(valid, rolled, -jnp.inf)


def _maxpool_same(x, radius):
    """(2r+1)x(2r+1) max pool, stride 1, same size, -inf padding.

    x: (1, H, W, C) f32 with (W, C) on (sublane, lane).  H (major axis) is
    pooled with cheap major-axis slices of a -inf-rimmed copy; W (sublane
    axis) is pooled with pltpu.roll + mask.
    """
    H = x.shape[1]
    rim = jnp.full((1, radius) + x.shape[2:], -jnp.inf, dtype=x.dtype)
    xp = jnp.concatenate([rim, x, rim], axis=1)
    rows = xp[:, 0:H]
    for dh in range(1, 2 * radius + 1):
        rows = jnp.maximum(rows, xp[:, dh:dh + H])
    out = rows
    for dw in range(1, radius + 1):
        out = jnp.maximum(out, _shift_neg_inf(rows, dw, 2))
        out = jnp.maximum(out, _shift_neg_inf(rows, -dw, 2))
    return out


def _spp_pool_kernel(y_ref, *out_refs, radii):
    """Cascaded pools: stage i pools stage i-1 (nested max windows compose),
    so k=(5,9,13) costs three 5x5 pools instead of 5x5 + 9x9 + 13x13.
    Pool math runs in f32 on the (tiny) VMEM block; I/O is bf16."""
    x = y_ref[...].astype(jnp.float32)
    for radius, o_ref in zip(radii, out_refs):
        x = _maxpool_same(x, radius)
        o_ref[...] = x.astype(o_ref.dtype)


def spp_pools(y_nhwc, ks=(5, 9, 13), *, cb=128):
    """len(ks) pooled maps (stride 1, same padding, -inf border semantics)."""
    N, H, W, C = y_nhwc.shape
    assert all(k % 2 == 1 for k in ks)
    radii = [ks[0] // 2]
    for ka, kb in zip(ks[:-1], ks[1:]):
        assert kb > ka and (kb - ka) % 2 == 0, "cascade needs odd, increasing ks"
        radii.append((kb - ka) // 2)

    # NOTE: if C % cb != 0 the last channel block uses masked partial-lane
    # stores — correct (pooling is per-channel) but slower; keep C a multiple
    # of 128 where possible.
    cb = min(cb, C)
    grid = (N, pl.cdiv(C, cb))              # independent axes -> parallel
    spec = pl.BlockSpec((1, H, W, cb), lambda n, c: (n, 0, 0, c))
    out_sd = jax.ShapeDtypeStruct((N, H, W, C), y_nhwc.dtype)

    compares = sum(2 * 2 * r for r in radii)      # per-element max ops
    cost = pl.CostEstimate(
        flops=compares * N * H * W * C,
        transcendentals=0,
        bytes_accessed=(1 + len(ks)) * N * H * W * C * y_nhwc.dtype.itemsize,
    )

    return pl.pallas_call(
        functools.partial(_spp_pool_kernel, radii=tuple(radii)),
        out_shape=tuple(out_sd for _ in ks),
        grid=grid,
        in_specs=[spec],
        out_specs=tuple(spec for _ in ks),
        compiler_params=pltpu.CompilerParams(
            dimension_semantics=("parallel", "parallel")),
        cost_estimate=cost,
    )(y_nhwc)


# --------------------------------------------------------------------------
# Parameter setup (glue)
# --------------------------------------------------------------------------
def _fold_bn(w_oihw, gamma, beta, mean, var, eps=BN_EPS):
    """Fold eval-mode BatchNorm into a 1x1 conv -> (Cin,Cout) weight, (Cout,) bias."""
    scale = gamma / jnp.sqrt(var + eps)
    w = w_oihw[:, :, 0, 0]                          # (Cout, Cin)
    w_fold = (w * scale[:, None]).T                 # (Cin, Cout)
    b_fold = beta - mean * scale
    return w_fold.astype(jnp.float32), b_fold.astype(jnp.float32)


def init_spp_params(key, c1, c2, ks=(5, 9, 13)):
    c_ = c1 // 2

    def conv_bn(kk, cin, cout):
        k1, k2, k3, k4, k5 = jax.random.split(kk, 5)
        w = 0.1 * jax.random.normal(k1, (cout, cin, 1, 1), jnp.float32)
        gamma = 1.0 + 0.1 * jax.random.normal(k2, (cout,), jnp.float32)
        beta = 0.1 * jax.random.normal(k3, (cout,), jnp.float32)
        mean = 0.1 * jax.random.normal(k4, (cout,), jnp.float32)
        var = jax.random.uniform(k5, (cout,), jnp.float32, 0.5, 1.5)
        return (w, gamma, beta, mean, var)

    ka, kb = jax.random.split(key)
    return {"cv1": conv_bn(ka, c1, c_),
            "cv2": conv_bn(kb, c_ * (len(ks) + 1), c2)}


# --------------------------------------------------------------------------
# SPP forward
# --------------------------------------------------------------------------
def spp_forward(x_nchw, params, ks=(5, 9, 13)):
    # NCHW <-> NHWC only at the module boundary (channels on TPU lanes inside).
    x = jnp.transpose(x_nchw, (0, 2, 3, 1))
    w1, b1 = _fold_bn(*params["cv1"])
    w2, b2 = _fold_bn(*params["cv2"])
    # cv1 (conv + BN + swish), intermediate kept in bf16.
    y = fused_pw_conv_bn_swish([x], w1, b1, out_dtype=INTER_DTYPE)
    # Cascaded 5x5 pools -> k=5,9,13 maps, single kernel, bf16 outputs.
    pools = spp_pools(y, ks)
    # cv2 with the channel concat fused into the matmul; final dtype = input dtype.
    out = fused_pw_conv_bn_swish([y, *pools], w2, b2, out_dtype=x_nchw.dtype)
    return jnp.transpose(out, (0, 3, 1, 2))


# --------------------------------------------------------------------------
# Pure-JAX reference (for the sanity check only)
# --------------------------------------------------------------------------
def spp_ref(x_nchw, params, ks=(5, 9, 13)):
    def conv_bn_swish(x, p):
        w, g, b, m, v = p
        scale = g / jnp.sqrt(v + BN_EPS)
        y = jnp.einsum("nchw,oc->nohw", x, w[:, :, 0, 0])
        y = y * scale[None, :, None, None] + (b - m * scale)[None, :, None, None]
        return y * jax.nn.sigmoid(y)

    def pool(x, k):
        p = k // 2
        return jax.lax.reduce_window(
            x, -jnp.inf, jax.lax.max,
            (1, 1, k, k), (1, 1, 1, 1),
            ((0, 0), (0, 0), (p, p), (p, p)))

    y = conv_bn_swish(x_nchw, params["cv1"])
    cat = jnp.concatenate([y] + [pool(y, k) for k in ks], axis=1)
    return conv_bn_swish(cat, params["cv2"])


# --------------------------------------------------------------------------
if __name__ == "__main__":
    key = jax.random.PRNGKey(0)
    kx, kp = jax.random.split(key)

    N, C1, H, W = 2, 4, 16, 16
    C2 = 8
    x = jax.random.normal(kx, (N, C1, H, W), jnp.float32)
    params = init_spp_params(kp, C1, C2)

    out = jax.block_until_ready(spp_forward(x, params))
    ref = jax.block_until_ready(spp_ref(x, params))

    assert out.shape == (N, C2, H, W), out.shape
    # Intentional precision choice: bf16 MXU operands, bf16 weights and bf16
    # intermediates (y / pooled maps) with f32 accumulation vs the f32 reference.
    np.testing.assert_allclose(np.asarray(out, np.float32), np.asarray(ref),
                               rtol=3e-2, atol=3e-2)

    print("KERNEL_OK")
</pallas_src>

<mosaic_0001>
module attributes {stable_mosaic.version = 11 : i64} {
  func.func @_fused_pw_conv_kernel(%arg0: i32, %arg1: i32, %arg2: memref<256x4xf32, #tpu.memory_space<vmem>>, %arg3: memref<4x2xbf16, #tpu.memory_space<vmem>>, %arg4: memref<1x2xf32, #tpu.memory_space<vmem>>, %arg5: memref<256x2xbf16, #tpu.memory_space<vmem>>) attributes {dimension_semantics = [#tpu.dimension_semantics<parallel>, #tpu.dimension_semantics<parallel>], iteration_bounds = array<i64: 1, 2>, scalar_prefetch = 0 : i64, scratch_operands = 0 : i64, tpu.core_type = #tpu.core_type<tc>, window_params = [{transform_indices = @transform_0, window_bounds = array<i64: 256, 4>}, {transform_indices = @transform_1, window_bounds = array<i64: 4, 2>}, {transform_indices = @transform_2, window_bounds = array<i64: 1, 2>}, {transform_indices = @transform_3, window_bounds = array<i64: 256, 2>}]} {
    %c0 = arith.constant 0 : index
    %c0_0 = arith.constant 0 : index
    %0 = vector.load %arg2[%c0, %c0_0] : memref<256x4xf32, #tpu.memory_space<vmem>>, vector<256x4xf32>
    %1 = arith.truncf %0 : vector<256x4xf32> to vector<256x4xbf16>
    %c0_1 = arith.constant 0 : index
    %c0_2 = arith.constant 0 : index
    %2 = vector.load %arg3[%c0_1, %c0_2] : memref<4x2xbf16, #tpu.memory_space<vmem>>, vector<4x2xbf16>
    %cst = arith.constant dense<0.000000e+00> : vector<256x2xf32>
    %3 = tpu.matmul %1, %2, %cst {dimension_numbers = #tpu.dot_dimension_numbers<[1], [0], [0], [1], [0, 0, 1, 1], [], []>} : vector<256x4xbf16>, vector<4x2xbf16>, vector<256x2xf32> -> vector<256x2xf32>
    %c0_3 = arith.constant 0 : index
    %c0_4 = arith.constant 0 : index
    %4 = vector.load %arg4[%c0_3, %c0_4] : memref<1x2xf32, #tpu.memory_space<vmem>>, vector<1x2xf32>
    %5 = vector.broadcast %4 : vector<1x2xf32> to vector<256x2xf32>
    %6 = arith.addf %3, %5 : vector<256x2xf32>
    %7 = arith.negf %6 : vector<256x2xf32>
    %8 = math.exp %7 : vector<256x2xf32>
    %cst_5 = arith.constant 1.000000e+00 : f32
    %9 = vector.broadcast %cst_5 : f32 to vector<256x2xf32>
    %10 = arith.addf %9, %8 : vector<256x2xf32>
    %11 = arith.divf %9, %10 : vector<256x2xf32>
    %12 = arith.mulf %6, %11 : vector<256x2xf32>
    %13 = arith.truncf %12 : vector<256x2xf32> to vector<256x2xbf16>
    %c0_6 = arith.constant 0 : index
    %c0_7 = arith.constant 0 : index
    %14 = vector.load %arg5[%c0_6, %c0_7] : memref<256x2xbf16, #tpu.memory_space<vmem>>, vector<256x2xbf16>
    tpu.vector_store %arg5[%c0_6, %c0_7], %13 {strides = array<i32>} : memref<256x2xbf16, #tpu.memory_space<vmem>>, vector<256x2xbf16>,
    return
  }
  func.func @transform_0(%arg0: i32, %arg1: i32) -> (i32, i32) {
    %c0_i32 = arith.constant 0 : i32
    %c0_i32_0 = arith.constant 0 : i32
    return %arg1, %c0_i32 : i32, i32
  }
  func.func @transform_1(%arg0: i32, %arg1: i32) -> (i32, i32) {
    %c0_i32 = arith.constant 0 : i32
    %c0_i32_0 = arith.constant 0 : i32
    return %c0_i32, %arg0 : i32, i32
  }
  func.func @transform_2(%arg0: i32, %arg1: i32) -> (i32, i32) {
    %c0_i32 = arith.constant 0 : i32
    %c0_i32_0 = arith.constant 0 : i32
    return %c0_i32, %arg0 : i32, i32
  }
  func.func @transform_3(%arg0: i32, %arg1: i32) -> (i32, i32) {
    %c0_i32 = arith.constant 0 : i32
    return %arg1, %arg0 : i32, i32
  }
}

</mosaic_0001>

<llo_original>
// kernel: tpu_custom_call.1
$region0: #{tpu_custom_call.1}
  #allocation0 [shape = 'u32[]', space=smem, size = 0x4, offset = 0x4, fixed_abs, tag = 'smem constant byte address 0x4 - core index']
  #allocation1 [shape = 'u32[144,128]{1,0:T(1,128)}', space=vmem, size = 0x12000, scoped, tag = 'internal scratch']
  %s0 = inlined_call_operand.vmem [shape: f32[512,4], index: 0, kind: input, shape index: {}]
  %s1 = inlined_call_operand.vmem [shape: bf16[4,2], index: 1, kind: input, shape index: {}]
  %s2 = inlined_call_operand.vmem [shape: f32[1,2], index: 2, kind: input, shape index: {}]
  %s3 = inlined_call_operand.vmem [shape: bf16[512,2], index: 3, kind: output, shape index: {}]
  %s4 = sld [smem:[#allocation0]]
  $region45: #{tpu_custom_call.1} parent=0
    _
  %s6 = ssub.s32 1, %s4
  %s7 = scalar_select 0, %s6, %s4
  loop: start=0, step=1, limit=4
  $region2: #{tpu_custom_call.1} parent=0 // loop_pre_header
    _
  $region3: #{tpu_custom_call.1} parent=0 // loop_header
    %s9 = sphi 0, %s13
    %p10 = scmp.ge.s32.totalorder %s9, 4
    %s16 = sphi 0, %s28
    %s17 = sphi 0, %s24
    %s18 = sphi 0, %s16
    %s19 = sphi 0, %s17
    %s20 = sphi 0, %s18
    %s21 = sphi 0, %s19
    %s31 = sphi 0, %s33
    %s34 = sphi 0, %s31
    %s35 = sphi 0, %s34
    %s51 = sphi 0, %s35
    %s57 = sphi 0, %s59
    %s60 = sphi 0, %s57
    %s61 = sphi 0, %s60
    %s77 = sphi 0, %s61
    %s83 = sphi 0, %s85
    %s86 = sphi 0, %s83
    %s87 = sphi 0, %s86
    %s103 = sphi 0, %s87
    %s111 = sphi 0, %s113
    %s114 = sphi 0, %s111
    %s115 = sphi 0, %s114
    %s131 = sphi 0, %s115
  $region4: #{tpu_custom_call.1} parent=0 // loop_header_branch
    %12 = sbr.rel (%p10) target = $region8
  $region5: #{tpu_custom_call.1} parent=0 // loop_body
    %s14 = ssub.s32 %s9, 1
    %s15 = ssub.s32 %s9, 2
    %s22 = sadd.s32 1, %s17
    %p23 = scmp.ge.s32.totalorder %s22, 2
    %s24 = scalar_select %p23, 0, %s22
    %s25 = sadd.s32 1, %s16
    %s26 = scalar_select %p23, %s25, %s16
    %p27 = scmp.ge.s32.totalorder %s26, 1
    %s28 = scalar_select %p27, 0, %s26
    %s29 = ssub.s32 %s17, %s24
    %p30 = scmp.eq.s32.totalorder %s29, 0
    %s32 = sadd.s32 %s31, 1
    %s33 = scalar_select %p30, %s31, %s32
    %p36 = pneg %p30
    %p37 = scmp.eq.s32.totalorder %s9, 1
    %p38 = por %p36, %p37
    %p39 = scmp.ne.s32.totalorder %s31, %s34
    %p40 = scmp.eq.s32.totalorder %s9, 0
    %p41 = por %p39, %p40
    %p42 = scmp.ne.s32.totalorder %s31, %s34
    %p43 = scmp.eq.s32.totalorder %s14, 1
    %p44 = por %p42, %p43
    %p45 = scmp.ne.s32.totalorder %s34, %s35
    %p46 = scmp.eq.s32.totalorder %s14, 0
    %p47 = por %p45, %p46
    %p48 = scmp.ne.s32.totalorder %s34, %s35
    %p49 = scmp.eq.s32.totalorder %s15, 1
    %p50 = por %p48, %p49
    %p52 = scmp.ne.s32.totalorder %s35, %s51
    %p53 = scmp.eq.s32.totalorder %s15, 0
    %p54 = por %p52, %p53
    %s55 = ssub.s32 %s16, %s28
    %p56 = scmp.eq.s32.totalorder %s55, 0
    %s58 = sadd.s32 %s57, 1
    %s59 = scalar_select %p56, %s57, %s58
    %p62 = pneg %p56
    %p63 = scmp.eq.s32.totalorder %s9, 1
    %p64 = por %p62, %p63
    %p65 = scmp.ne.s32.totalorder %s57, %s60
    %p66 = scmp.eq.s32.totalorder %s9, 0
    %p67 = por %p65, %p66
    %p68 = scmp.ne.s32.totalorder %s57, %s60
    %p69 = scmp.eq.s32.totalorder %s14, 1
    %p70 = por %p68, %p69
    %p71 = scmp.ne.s32.totalorder %s60, %s61
    %p72 = scmp.eq.s32.totalorder %s14, 0
    %p73 = por %p71, %p72
    %p74 = scmp.ne.s32.totalorder %s60, %s61
    %p75 = scmp.eq.s32.totalorder %s15, 1
    %p76 = por %p74, %p75
    %p78 = scmp.ne.s32.totalorder %s61, %s77
    %p79 = scmp.eq.s32.totalorder %s15, 0
    %p80 = por %p78, %p79
    %s81 = ssub.s32 %s16, %s28
    %p82 = scmp.eq.s32.totalorder %s81, 0
    %s84 = sadd.s32 %s83, 1
    %s85 = scalar_select %p82, %s83, %s84
    %p88 = pneg %p82
    %p89 = scmp.eq.s32.totalorder %s9, 1
    %p90 = por %p88, %p89
    %p91 = scmp.ne.s32.totalorder %s83, %s86
    %p92 = scmp.eq.s32.totalorder %s9, 0
    %p93 = por %p91, %p92
    %p94 = scmp.ne.s32.totalorder %s83, %s86
    %p95 = scmp.eq.s32.totalorder %s14, 1
    %p96 = por %p94, %p95
    %p97 = scmp.ne.s32.totalorder %s86, %s87
    %p98 = scmp.eq.s32.totalorder %s14, 0
    %p99 = por %p97, %p98
    %p100 = scmp.ne.s32.totalorder %s86, %s87
    %p101 = scmp.eq.s32.totalorder %s15, 1
    %p102 = por %p100, %p101
    %p104 = scmp.ne.s32.totalorder %s87, %s103
    %p105 = scmp.eq.s32.totalorder %s15, 0
    %p106 = por %p104, %p105
    %s107 = ssub.s32 %s17, %s24
    %s108 = ssub.s32 %s16, %s28
    %s109 = sor.u32 %s107, %s108
    %p110 = scmp.eq.s32.totalorder %s109, 0
    %s112 = sadd.s32 %s111, 1
    %s113 = scalar_select %p110, %s111, %s112
    %p116 = pneg %p110
    %p117 = scmp.eq.s32.totalorder %s9, 1
    %p118 = por %p116, %p117
    %p119 = scmp.ne.s32.totalorder %s111, %s114
    %p120 = scmp.eq.s32.totalorder %s9, 0
    %p121 = por %p119, %p120
    %p122 = scmp.ne.s32.totalorder %s111, %s114
    %p123 = scmp.eq.s32.totalorder %s14, 1
    %p124 = por %p122, %p123
    %p125 = scmp.ne.s32.totalorder %s114, %s115
    %p126 = scmp.eq.s32.totalorder %s14, 0
    %p127 = por %p125, %p126
    %p128 = scmp.ne.s32.totalorder %s114, %s115
    %p129 = scmp.eq.s32.totalorder %s15, 1
    %p130 = por %p128, %p129
    %p132 = scmp.ne.s32.totalorder %s115, %s131
    %p133 = scmp.eq.s32.totalorder %s15, 0
    %p134 = por %p132, %p133
    %p135 = scmp.le.s32.totalorder 1, %s9
    %p136 = scmp.lt.s32.totalorder %s9, 3
    %p137 = pnand %p135, %p136
    %p138 = pneg %p137
    // Predicated region
    $region9: #{tpu_custom_call.1} parent=5 // pred_check
      _
    $region10: #{tpu_custom_call.1} parent=5 // pred_check_branch
      %140 = sbr.rel (%p137) target = $region12
    $region11: #{tpu_custom_call.1} parent=5 // pred_region
      %s141 = ssub.s32 %s9, 1
      // Predicated region
      $region13: #{tpu_custom_call.1} parent=11 // pred_check
        %p142 = pneg %p73
      $region14: #{tpu_custom_call.1} parent=11 // pred_check_branch
        %144 = sbr.rel (%p142) target = $region16
      $region15: #{tpu_custom_call.1} parent=11 // pred_region
        %p145 = scmp.lt.s32.totalorder %s18, 0
        %s146 = scalar_select %p145, %s18, 0
        %s147 = smul.addr %s146, 2
        %s148 = scalar_lea.vmem %s1, %s147
      $region16: #{tpu_custom_call.1} parent=11 // pred_fallthru
        _
      // Predicated region
      $region17: #{tpu_custom_call.1} parent=11 // pred_check
        %p149 = pneg %p99
      $region18: #{tpu_custom_call.1} parent=11 // pred_check_branch
        %151 = sbr.rel (%p149) target = $region20
      $region19: #{tpu_custom_call.1} parent=11 // pred_region
        %p152 = scmp.lt.s32.totalorder %s18, 0
        %s153 = scalar_select %p152, %s18, 0
        %s154 = scalar_lea.vmem %s2, %s153
      $region20: #{tpu_custom_call.1} parent=11 // pred_fallthru
        _
    $region12: #{tpu_custom_call.1} parent=5 // pred_fallthru
      _
    %p155 = scmp.lt.s32.totalorder %s9, 2
    // Predicated region
    $region21: #{tpu_custom_call.1} parent=5 // pred_check
      %p156 = pneg %p155
    $region22: #{tpu_custom_call.1} parent=5 // pred_check_branch
      %158 = sbr.rel (%p156) target = $region24
    $region23: #{tpu_custom_call.1} parent=5 // pred_region
      // Predicated region
      $region25: #{tpu_custom_call.1} parent=23 // pred_check
        %p159 = pneg %p41
      $region26: #{tpu_custom_call.1} parent=23 // pred_check_branch
        %161 = sbr.rel (%p159) target = $region28
      $region27: #{tpu_custom_call.1} parent=23 // pred_region
        %s162 = smul.u32 32, %s17
        %p163 = scmp.lt.s32.totalorder %s162, 63
        %s164 = scalar_select %p163, %s162, 63
        %s165 = smul.addr %s164, 8
        %s166 = scalar_lea.vmem %s0, %s165
        %s167 = smul.u32 32, %s17
      $region28: #{tpu_custom_call.1} parent=23 // pred_fallthru
        _
    $region24: #{tpu_custom_call.1} parent=5 // pred_fallthru
      _
    %p168 = scmp.le.s32.totalorder 1, %s9
    %p169 = scmp.lt.s32.totalorder %s9, 3
    %p170 = pnand %p168, %p169
    %p171 = pneg %p170
    // Predicated region
    $region29: #{tpu_custom_call.1} parent=5 // pred_check
      _
    $region30: #{tpu_custom_call.1} parent=5 // pred_check_branch
      %173 = sbr.rel (%p170) target = $region32
    $region31: #{tpu_custom_call.1} parent=5 // pred_region
      %s174 = ssub.s32 %s9, 1
      %s175 = smul.u32 32, %s19
      %p176 = scmp.lt.s32.totalorder %s175, 63
      %s177 = scalar_select %p176, %s175, 63
      %s178 = smul.addr %s177, 8
      %s179 = scalar_lea.vmem %s0, %s178
      %p180 = pneg %p47
      %p181 = pneg %p44
      %p182 = scmp.lt.s32.totalorder %s18, 0
      %s183 = scalar_select %p182, %s18, 0
      %s184 = smul.addr %s183, 2
      %s185 = scalar_lea.vmem %s1, %s184
      %p186 = pneg %p73
      %p187 = pneg %p70
      %p188 = scmp.lt.s32.totalorder %s18, 0
      %s189 = scalar_select %p188, %s18, 0
      %s190 = scalar_lea.vmem %s2, %s189
      %p191 = pneg %p99
      %p192 = pneg %p96
      %p193 = pneg %p127
      %p194 = pneg %p124
      %s195 = smul.u32 32, %s19
      %p196 = scmp.lt.s32.totalorder %s195, 63
      %s197 = scalar_select %p196, %s195, 63
      %p198 = scmp.lt.s32.totalorder %s18, 0
      %s199 = scalar_select %p198, %s18, 0
      %s200 = sadd.s32 %s199, %s197
      %s201 = smul.addr %s200, 4
      %s202 = scalar_lea.vmem %s3, %s201
      %s203 = smul.u32 32, %s19
      %p204 = scmp.lt.s32.totalorder %s203, 63
      %s205 = scalar_select %p204, %s203, 63
      %s206 = smul.addr %s205, 8
      %s207 = scalar_lea.vmem %s0, %s206
      %s208 = smul.u32 32, %s19
      %p209 = scmp.lt.s32.totalorder %s18, 0
      %s210 = scalar_select %p209, %s18, 0
      %s211 = smul.addr %s210, 2
      %s212 = scalar_lea.vmem %s1, %s211
      %p213 = scmp.lt.s32.totalorder %s18, 0
      %s214 = scalar_select %p213, %s18, 0
      %s215 = scalar_lea.vmem %s2, %s214
      %s216 = smul.u32 32, %s19
      %p217 = scmp.lt.s32.totalorder %s216, 63
      %s218 = scalar_select %p217, %s216, 63
      %p219 = scmp.lt.s32.totalorder %s18, 0
      %s220 = scalar_select %p219, %s18, 0
      %s221 = sadd.s32 %s220, %s218
      %s222 = smul.addr %s221, 4
      %s223 = scalar_lea.vmem %s3, %s222
      %s224 = smul.u32 32, %s19
      %v226 = vld [vmem:[%s207] sm:$0xff]
      %v227 = vld [vmem:[%s207 + $0x8] sm:$0xff]
      %v228 = vld [vmem:[%s207 + $0x10] sm:$0xff]
      %v229 = vld [vmem:[%s207 + $0x18] sm:$0xff]
      %v230 = vld [vmem:[%s207 + $0x20] sm:$0xff]
      %v231 = vld [vmem:[%s207 + $0x28] sm:$0xff]
      %v232 = vld [vmem:[%s207 + $0x30] sm:$0xff]
      %v233 = vld [vmem:[%s207 + $0x38] sm:$0xff]
      %v234 = vld [vmem:[%s207 + $0x40] sm:$0xff]
      %v235 = vld [vmem:[%s207 + $0x48] sm:$0xff]
      %v236 = vld [vmem:[%s207 + $0x50] sm:$0xff]
      %v237 = vld [vmem:[%s207 + $0x58] sm:$0xff]
      %v238 = vld [vmem:[%s207 + $0x60] sm:$0xff]
      %v239 = vld [vmem:[%s207 + $0x68] sm:$0xff]
      %v240 = vld [vmem:[%s207 + $0x70] sm:$0xff]
      %v241 = vld [vmem:[%s207 + $0x78] sm:$0xff]
      %v242 = vld [vmem:[%s207 + $0x80] sm:$0xff]
      %v243 = vld [vmem:[%s207 + $0x88] sm:$0xff]
      %v244 = vld [vmem:[%s207 + $0x90] sm:$0xff]
      %v245 = vld [vmem:[%s207 + $0x98] sm:$0xff]
      %v246 = vld [vmem:[%s207 + $0xa0] sm:$0xff]
      %v247 = vld [vmem:[%s207 + $0xa8] sm:$0xff]
      %v248 = vld [vmem:[%s207 + $0xb0] sm:$0xff]
      %v249 = vld [vmem:[%s207 + $0xb8] sm:$0xff]
      %v250 = vld [vmem:[%s207 + $0xc0] sm:$0xff]
      %v251 = vld [vmem:[%s207 + $0xc8] sm:$0xff]
      %v252 = vld [vmem:[%s207 + $0xd0] sm:$0xff]
      %v253 = vld [vmem:[%s207 + $0xd8] sm:$0xff]
      %v254 = vld [vmem:[%s207 + $0xe0] sm:$0xff]
      %v255 = vld [vmem:[%s207 + $0xe8] sm:$0xff]
      %v256 = vld [vmem:[%s207 + $0xf0] sm:$0xff]
      %v257 = vld [vmem:[%s207 + $0xf8] sm:$0xff]
      %v258 = vpack.c.bf16 %v227, %v226
      %v259 = vpack.c.bf16 %v229, %v228
      %v260 = vpack.c.bf16 %v231, %v230
      %v261 = vpack.c.bf16 %v233, %v232
      %v262 = vpack.c.bf16 %v235, %v234
      %v263 = vpack.c.bf16 %v237, %v236
      %v264 = vpack.c.bf16 %v239, %v238
      %v265 = vpack.c.bf16 %v241, %v240
      %v266 = vpack.c.bf16 %v243, %v242
      %v267 = vpack.c.bf16 %v245, %v244
      %v268 = vpack.c.bf16 %v247, %v246
      %v269 = vpack.c.bf16 %v249, %v248
      %v270 = vpack.c.bf16 %v251, %v250
      %v271 = vpack.c.bf16 %v253, %v252
      %v272 = vpack.c.bf16 %v255, %v254
      %v273 = vpack.c.bf16 %v257, %v256
      %v274 = vld [vmem:[%s212] sm:$0x3]
      %v275 = vld [vmem:[%s215] sm:$0x1]
      %v277 = vlaneseq
      %v278 = vshrl.u32 %v277, 7
      %v279 = vsub.s32 0, %v278
      %v280 = vrot.slane %v275, %v279
      %vm282 = vcmask 31744
      %v284 = vsel %vm282, %v258, 0
      %v287 = vsel %vm282, %v259, 0
      %v290 = vsel %vm282, %v260, 0
      %v293 = vsel %vm282, %v261, 0
      %v296 = vsel %vm282, %v262, 0
      %v299 = vsel %vm282, %v263, 0
      %v302 = vsel %vm282, %v264, 0
      %v305 = vsel %vm282, %v265, 0
      %v308 = vsel %vm282, %v266, 0
      %v311 = vsel %vm282, %v267, 0
      %v314 = vsel %vm282, %v268, 0
      %v317 = vsel %vm282, %v269, 0
      %v320 = vsel %vm282, %v270, 0
      %v323 = vsel %vm282, %v271, 0
      %v326 = vsel %vm282, %v272, 0
      %v329 = vsel %vm282, %v273, 0
      %vm331 = vcmask 1041408
      %v333 = vsel %vm331, %v274, 0
      %335 = vmatprep.subr.bf16.mxu0 0
      %336 = vmatpush1.bf16.msra.mxu0 %v333
      %337 = vmatprep.subr.bf16.mxu0 0
      %338 = vmatpush1.bf16.msra.mxu0 0
      %339 = vmatprep.subr.bf16.mxu0 0
      %340 = vmatpush1.bf16.msra.mxu0 0
      %341 = vmatprep.subr.bf16.mxu0 0
      %342 = vmatpush1.bf16.msra.mxu0 0
      %343 = vmatprep.subr.bf16.mxu0 0
      %344 = vmatpush1.bf16.msra.mxu0 0
      %345 = vmatprep.subr.bf16.mxu0 0
      %346 = vmatpush1.bf16.msra.mxu0 0
      %347 = vmatprep.subr.bf16.mxu0 0
      %348 = vmatpush1.bf16.msra.mxu0 0
      %349 = vmatprep.subr.bf16.mxu0 0
      %350 = vmatpush1.bf16.msra.mxu0 0
      %351 = vmatprep.subr.bf16.mxu0 0
      %352 = vmatpush1.bf16.msra.mxu0 0
      %353 = vmatprep.subr.bf16.mxu0 0
      %354 = vmatpush1.bf16.msra.mxu0 0
      %355 = vmatprep.subr.bf16.mxu0 0
      %356 = vmatpush1.bf16.msra.mxu0 0
      %357 = vmatprep.subr.bf16.mxu0 0
      %358 = vmatpush1.bf16.msra.mxu0 0
      %359 = vmatprep.subr.bf16.mxu0 0
      %360 = vmatpush1.bf16.msra.mxu0 0
      %361 = vmatprep.subr.bf16.mxu0 0
      %362 = vmatpush1.bf16.msra.mxu0 0
      %363 = vmatprep.subr.bf16.mxu0 0
      %364 = vmatpush1.bf16.msra.mxu0 0
      %365 = vmatprep.subr.bf16.mxu0 0
      %366 = vmatpush1.bf16.msra.mxu0 0
      %367 = vmatprep.mubr.bf16.mxu0 0
      %368 = vmatmul.mubr.bf16.gmra.mrb[0].mxu0 %v284
      %v369 = vpop.f32.mrb[0].mxu0
      %v370 = vadd.f32 %v280, %v369
      %v371 = vpop.f32.mrb[0].mxu0
      %v372 = vpop.f32.mrb[0].mxu0
      %v373 = vadd.f32 %v280, %v372
      %v374 = vpop.f32.mrb[0].mxu0
      %375 = vmatprep.mubr.bf16.mxu0 0
      %376 = vmatmul.mubr.bf16.gmra.mrb[0].mxu0 %v287
      %v377 = vpop.f32.mrb[0].mxu0
      %v378 = vadd.f32 %v280, %v377
      %v379 = vpop.f32.mrb[0].mxu0
      %v380 = vpop.f32.mrb[0].mxu0
      %v381 = vadd.f32 %v280, %v380
      %v382 = vpop.f32.mrb[0].mxu0
      %383 = vmatprep.mubr.bf16.mxu0 0
      %384 = vmatmul.mubr.bf16.gmra.mrb[0].mxu0 %v290
      %v385 = vpop.f32.mrb[0].mxu0
      %v386 = vadd.f32 %v280, %v385
      %v387 = vpop.f32.mrb[0].mxu0
      %v388 = vpop.f32.mrb[0].mxu0
      %v389 = vadd.f32 %v280, %v388
      %v390 = vpop.f32.mrb[0].mxu0
      %391 = vmatprep.mubr.bf16.mxu0 0
      %392 = vmatmul.mubr.bf16.gmra.mrb[0].mxu0 %v293
      %v393 = vpop.f32.mrb[0].mxu0
      %v394 = vadd.f32 %v280, %v393
      %v395 = vpop.f32.mrb[0].mxu0
      %v396 = vpop.f32.mrb[0].mxu0
      %v397 = vadd.f32 %v280, %v396
      %v398 = vpop.f32.mrb[0].mxu0
      %399 = vmatprep.mubr.bf16.mxu0 0
      %400 = vmatmul.mubr.bf16.gmra.mrb[0].mxu0 %v296
      %v401 = vpop.f32.mrb[0].mxu0
      %v402 = vadd.f32 %v280, %v401
      %v403 = vpop.f32.mrb[0].mxu0
      %v404 = vpop.f32.mrb[0].mxu0
      %v405 = vadd.f32 %v280, %v404
      %v406 = vpop.f32.mrb[0].mxu0
      %407 = vmatprep.mubr.bf16.mxu0 0
      %408 = vmatmul.mubr.bf16.gmra.mrb[0].mxu0 %v299
      %v409 = vpop.f32.mrb[0].mxu0
      %v410 = vadd.f32 %v280, %v409
      %v411 = vpop.f32.mrb[0].mxu0
      %v412 = vpop.f32.mrb[0].mxu0
      %v413 = vadd.f32 %v280, %v412
      %v414 = vpop.f32.mrb[0].mxu0
      %415 = vmatprep.mubr.bf16.mxu0 0
      %416 = vmatmul.mubr.bf16.gmra.mrb[0].mxu0 %v302
      %v417 = vpop.f32.mrb[0].mxu0
      %v418 = vadd.f32 %v280, %v417
      %v419 = vpop.f32.mrb[0].mxu0
      %v420 = vpop.f32.mrb[0].mxu0
      %v421 = vadd.f32 %v280, %v420
      %v422 = vpop.f32.mrb[0].mxu0
      %423 = vmatprep.mubr.bf16.mxu0 0
      %424 = vmatmul.mubr.bf16.gmra.mrb[0].mxu0 %v305
      %v425 = vpop.f32.mrb[0].mxu0
      %v426 = vadd.f32 %v280, %v425
      %v427 = vpop.f32.mrb[0].mxu0
      %v428 = vpop.f32.mrb[0].mxu0
      %v429 = vadd.f32 %v280, %v428
      %v430 = vpop.f32.mrb[0].mxu0
      %431 = vmatprep.mubr.bf16.mxu0 0
      %432 = vmatmul.mubr.bf16.gmra.mrb[0].mxu0 %v308
      %v433 = vpop.f32.mrb[0].mxu0
      %v434 = vadd.f32 %v280, %v433
      %v435 = vpop.f32.mrb[0].mxu0
      %v436 = vpop.f32.mrb[0].mxu0
      %v437 = vadd.f32 %v280, %v436
      %v438 = vpop.f32.mrb[0].mxu0
      %439 = vmatprep.mubr.bf16.mxu0 0
      %440 = vmatmul.mubr.bf16.gmra.mrb[0].mxu0 %v311
      %v441 = vpop.f32.mrb[0].mxu0
      %v442 = vadd.f32 %v280, %v441
      %v443 = vpop.f32.mrb[0].mxu0
      %v444 = vpop.f32.mrb[0].mxu0
      %v445 = vadd.f32 %v280, %v444
      %v446 = vpop.f32.mrb[0].mxu0
      %447 = vmatprep.mubr.bf16.mxu0 0
      %448 = vmatmul.mubr.bf16.gmra.mrb[0].mxu0 %v314
      %v449 = vpop.f32.mrb[0].mxu0
      %v450 = vadd.f32 %v280, %v449
      %v451 = vpop.f32.mrb[0].mxu0
      %v452 = vpop.f32.mrb[0].mxu0
      %v453 = vadd.f32 %v280, %v452
      %v454 = vpop.f32.mrb[0].mxu0
      %455 = vmatprep.mubr.bf16.mxu0 0
      %456 = vmatmul.mubr.bf16.gmra.mrb[0].mxu0 %v317
      %v457 = vpop.f32.mrb[0].mxu0
      %v458 = vadd.f32 %v280, %v457
      %v459 = vpop.f32.mrb[0].mxu0
      %v460 = vpop.f32.mrb[0].mxu0
      %v461 = vadd.f32 %v280, %v460
      %v462 = vpop.f32.mrb[0].mxu0
      %463 = vmatprep.mubr.bf16.mxu0 0
      %464 = vmatmul.mubr.bf16.gmra.mrb[0].mxu0 %v320
      %v465 = vpop.f32.mrb[0].mxu0
      %v466 = vadd.f32 %v280, %v465
      %v467 = vpop.f32.mrb[0].mxu0
      %v468 = vpop.f32.mrb[0].mxu0
      %v469 = vadd.f32 %v280, %v468
      %v470 = vpop.f32.mrb[0].mxu0
      %471 = vmatprep.mubr.bf16.mxu0 0
      %472 = vmatmul.mubr.bf16.gmra.mrb[0].mxu0 %v323
      %v473 = vpop.f32.mrb[0].mxu0
      %v474 = vadd.f32 %v280, %v473
      %v475 = vpop.f32.mrb[0].mxu0
      %v476 = vpop.f32.mrb[0].mxu0
      %v477 = vadd.f32 %v280, %v476
      %v478 = vpop.f32.mrb[0].mxu0
      %479 = vmatprep.mubr.bf16.mxu0 0
      %480 = vmatmul.mubr.bf16.gmra.mrb[0].mxu0 %v326
      %v481 = vpop.f32.mrb[0].mxu0
      %v482 = vadd.f32 %v280, %v481
      %v483 = vpop.f32.mrb[0].mxu0
      %v484 = vpop.f32.mrb[0].mxu0
      %v485 = vadd.f32 %v280, %v484
      %v486 = vpop.f32.mrb[0].mxu0
      %487 = vmatprep.mubr.bf16.mxu0 0
      %488 = vmatmul.mubr.bf16.gmra.mrb[0].mxu0 %v329
      %v489 = vpop.f32.mrb[0].mxu0
      %v490 = vadd.f32 %v280, %v489
      %v491 = vpop.f32.mrb[0].mxu0
      %v492 = vpop.f32.mrb[0].mxu0
      %v493 = vadd.f32 %v280, %v492
      %v494 = vpop.f32.mrb[0].mxu0
      %495 = vdwg.mxu0
      %v496 = vxor.u32 %v370, 2147483648
      %v497 = vxor.u32 %v373, 2147483648
      %v498 = vxor.u32 %v378, 2147483648
      %v499 = vxor.u32 %v381, 2147483648
      %v500 = vxor.u32 %v386, 2147483648
      %v501 = vxor.u32 %v389, 2147483648
      %v502 = vxor.u32 %v394, 2147483648
      %v503 = vxor.u32 %v397, 2147483648
      %v504 = vxor.u32 %v402, 2147483648
      %v505 = vxor.u32 %v405, 2147483648
      %v506 = vxor.u32 %v410, 2147483648
      %v507 = vxor.u32 %v413, 2147483648
      %v508 = vxor.u32 %v418, 2147483648
      %v509 = vxor.u32 %v421, 2147483648
      %v510 = vxor.u32 %v426, 2147483648
      %v511 = vxor.u32 %v429, 2147483648
      %v512 = vxor.u32 %v434, 2147483648
      %v513 = vxor.u32 %v437, 2147483648
      %v514 = vxor.u32 %v442, 2147483648
      %v515 = vxor.u32 %v445, 2147483648
      %v516 = vxor.u32 %v450, 2147483648
      %v517 = vxor.u32 %v453, 2147483648
      %v518 = vxor.u32 %v458, 2147483648
      %v519 = vxor.u32 %v461, 2147483648
      %v520 = vxor.u32 %v466, 2147483648
      %v521 = vxor.u32 %v469, 2147483648
      %v522 = vxor.u32 %v474, 2147483648
      %v523 = vxor.u32 %v477, 2147483648
      %v524 = vxor.u32 %v482, 2147483648
      %v525 = vxor.u32 %v485, 2147483648
      %v526 = vxor.u32 %v490, 2147483648
      %v527 = vxor.u32 %v493, 2147483648
      %v528 = vmul.f32 %v496, 1.442695
      %v529 = vpow.pop %v528
      %v530 = vmul.f32 %v497, 1.442695
      %v531 = vpow.pop %v530
      %v532 = vmul.f32 %v498, 1.442695
      %v533 = vpow.pop %v532
      %v534 = vmul.f32 %v499, 1.442695
      %v535 = vpow.pop %v534
      %v536 = vmul.f32 %v500, 1.442695
      %v537 = vpow.pop %v536
      %v538 = vmul.f32 %v501, 1.442695
      %v539 = vpow.pop %v538
      %v540 = vmul.f32 %v502, 1.442695
      %v541 = vpow.pop %v540
      %v542 = vmul.f32 %v503, 1.442695
      %v543 = vpow.pop %v542
      %v544 = vmul.f32 %v504, 1.442695
      %v545 = vpow.pop %v544
      %v546 = vmul.f32 %v505, 1.442695
      %v547 = vpow.pop %v546
      %v548 = vmul.f32 %v506, 1.442695
      %v549 = vpow.pop %v548
      %v550 = vmul.f32 %v507, 1.442695
      %v551 = vpow.pop %v550
      %v552 = vmul.f32 %v508, 1.442695
      %v553 = vpow.pop %v552
      %v554 = vmul.f32 %v509, 1.442695
      %v555 = vpow.pop %v554
      %v556 = vmul.f32 %v510, 1.442695
      %v557 = vpow.pop %v556
      %v558 = vmul.f32 %v511, 1.442695
      %v559 = vpow.pop %v558
      %v560 = vmul.f32 %v512, 1.442695
      %v561 = vpow.pop %v560
      %v562 = vmul.f32 %v513, 1.442695
      %v563 = vpow.pop %v562
      %v564 = vmul.f32 %v514, 1.442695
      %v565 = vpow.pop %v564
      %v566 = vmul.f32 %v515, 1.442695
      %v567 = vpow.pop %v566
      %v568 = vmul.f32 %v516, 1.442695
      %v569 = vpow.pop %v568
      %v570 = vmul.f32 %v517, 1.442695
      %v571 = vpow.pop %v570
      %v572 = vmul.f32 %v518, 1.442695
      %v573 = vpow.pop %v572
      %v574 = vmul.f32 %v519, 1.442695
      %v575 = vpow.pop %v574
      %v576 = vmul.f32 %v520, 1.442695
      %v577 = vpow.pop %v576
      %v578 = vmul.f32 %v521, 1.442695
      %v579 = vpow.pop %v578
      %v580 = vmul.f32 %v522, 1.442695
      %v581 = vpow.pop %v580
      %v582 = vmul.f32 %v523, 1.442695
      %v583 = vpow.pop %v582
      %v584 = vmul.f32 %v524, 1.442695
      %v585 = vpow.pop %v584
      %v586 = vmul.f32 %v525, 1.442695
      %v587 = vpow.pop %v586
      %v588 = vmul.f32 %v526, 1.442695
      %v589 = vpow.pop %v588
      %v590 = vmul.f32 %v527, 1.442695
      %v591 = vpow.pop %v590
      %v592 = vadd.f32 %v529, 1.0
      %v593 = vadd.f32 %v531, 1.0
      %v594 = vadd.f32 %v533, 1.0
      %v595 = vadd.f32 %v535, 1.0
      %v596 = vadd.f32 %v537, 1.0
      %v597 = vadd.f32 %v539, 1.0
      %v598 = vadd.f32 %v541, 1.0
      %v599 = vadd.f32 %v543, 1.0
      %v600 = vadd.f32 %v545, 1.0
      %v601 = vadd.f32 %v547, 1.0
      %v602 = vadd.f32 %v549, 1.0
      %v603 = vadd.f32 %v551, 1.0
      %v604 = vadd.f32 %v553, 1.0
      %v605 = vadd.f32 %v555, 1.0
      %v606 = vadd.f32 %v557, 1.0
      %v607 = vadd.f32 %v559, 1.0
      %v608 = vadd.f32 %v561, 1.0
      %v609 = vadd.f32 %v563, 1.0
      %v610 = vadd.f32 %v565, 1.0
      %v611 = vadd.f32 %v567, 1.0
      %v612 = vadd.f32 %v569, 1.0
      %v613 = vadd.f32 %v571, 1.0
      %v614 = vadd.f32 %v573, 1.0
      %v615 = vadd.f32 %v575, 1.0
      %v616 = vadd.f32 %v577, 1.0
      %v617 = vadd.f32 %v579, 1.0
      %v618 = vadd.f32 %v581, 1.0
      %v619 = vadd.f32 %v583, 1.0
      %v620 = vadd.f32 %v585, 1.0
      %v621 = vadd.f32 %v587, 1.0
      %v622 = vadd.f32 %v589, 1.0
      %v623 = vadd.f32 %v591, 1.0
      %v624 = vrcp.pop %v592
      %v625 = vmul.f32 1.0, %v624
      %v626 = vrcp.pop %v593
      %v627 = vmul.f32 1.0, %v626
      %v628 = vrcp.pop %v594
      %v629 = vmul.f32 1.0, %v628
      %v630 = vrcp.pop %v595
      %v631 = vmul.f32 1.0, %v630
      %v632 = vrcp.pop %v596
      %v633 = vmul.f32 1.0, %v632
      %v634 = vrcp.pop %v597
      %v635 = vmul.f32 1.0, %v634
      %v636 = vrcp.pop %v598
      %v637 = vmul.f32 1.0, %v636
      %v638 = vrcp.pop %v599
      %v639 = vmul.f32 1.0, %v638
      %v640 = vrcp.pop %v600
      %v641 = vmul.f32 1.0, %v640
      %v642 = vrcp.pop %v601
      %v643 = vmul.f32 1.0, %v642
      %v644 = vrcp.pop %v602
      %v645 = vmul.f32 1.0, %v644
      %v646 = vrcp.pop %v603
      %v647 = vmul.f32 1.0, %v646
      %v648 = vrcp.pop %v604
      %v649 = vmul.f32 1.0, %v648
      %v650 = vrcp.pop %v605
      %v651 = vmul.f32 1.0, %v650
      %v652 = vrcp.pop %v606
      %v653 = vmul.f32 1.0, %v652
      %v654 = vrcp.pop %v607
      %v655 = vmul.f32 1.0, %v654
      %v656 = vrcp.pop %v608
      %v657 = vmul.f32 1.0, %v656
      %v658 = vrcp.pop %v609
      %v659 = vmul.f32 1.0, %v658
      %v660 = vrcp.pop %v610
      %v661 = vmul.f32 1.0, %v660
      %v662 = vrcp.pop %v611
      %v663 = vmul.f32 1.0, %v662
      %v664 = vrcp.pop %v612
      %v665 = vmul.f32 1.0, %v664
      %v666 = vrcp.pop %v613
      %v667 = vmul.f32 1.0, %v666
      %v668 = vrcp.pop %v614
      %v669 = vmul.f32 1.0, %v668
      %v670 = vrcp.pop %v615
      %v671 = vmul.f32 1.0, %v670
      %v672 = vrcp.pop %v616
      %v673 = vmul.f32 1.0, %v672
      %v674 = vrcp.pop %v617
      %v675 = vmul.f32 1.0, %v674
      %v676 = vrcp.pop %v618
      %v677 = vmul.f32 1.0, %v676
      %v678 = vrcp.pop %v619
      %v679 = vmul.f32 1.0, %v678
      %v680 = vrcp.pop %v620
      %v681 = vmul.f32 1.0, %v680
      %v682 = vrcp.pop %v621
      %v683 = vmul.f32 1.0, %v682
      %v684 = vrcp.pop %v622
      %v685 = vmul.f32 1.0, %v684
      %v686 = vrcp.pop %v623
      %v687 = vmul.f32 1.0, %v686
      %v688 = vmul.f32 %v370, %v625
      %v689 = vmul.f32 %v373, %v627
      %v690 = vmul.f32 %v378, %v629
      %v691 = vmul.f32 %v381, %v631
      %v692 = vmul.f32 %v386, %v633
      %v693 = vmul.f32 %v389, %v635
      %v694 = vmul.f32 %v394, %v637
      %v695 = vmul.f32 %v397, %v639
      %v696 = vmul.f32 %v402, %v641
      %v697 = vmul.f32 %v405, %v643
      %v698 = vmul.f32 %v410, %v645
      %v699 = vmul.f32 %v413, %v647
      %v700 = vmul.f32 %v418, %v649
      %v701 = vmul.f32 %v421, %v651
      %v702 = vmul.f32 %v426, %v653
      %v703 = vmul.f32 %v429, %v655
      %v704 = vmul.f32 %v434, %v657
      %v705 = vmul.f32 %v437, %v659
      %v706 = vmul.f32 %v442, %v661
      %v707 = vmul.f32 %v445, %v663
      %v708 = vmul.f32 %v450, %v665
      %v709 = vmul.f32 %v453, %v667
      %v710 = vmul.f32 %v458, %v669
      %v711 = vmul.f32 %v461, %v671
      %v712 = vmul.f32 %v466, %v673
      %v713 = vmul.f32 %v469, %v675
      %v714 = vmul.f32 %v474, %v677
      %v715 = vmul.f32 %v477, %v679
      %v716 = vmul.f32 %v482, %v681
      %v717 = vmul.f32 %v485, %v683
      %v718 = vmul.f32 %v490, %v685
      %v719 = vmul.f32 %v493, %v687
      %v720 = vpack.c.bf16 %v689, %v688
      %v721 = vpack.c.bf16 %v691, %v690
      %v722 = vpack.c.bf16 %v693, %v692
      %v723 = vpack.c.bf16 %v695, %v694
      %v724 = vpack.c.bf16 %v697, %v696
      %v725 = vpack.c.bf16 %v699, %v698
      %v726 = vpack.c.bf16 %v701, %v700
      %v727 = vpack.c.bf16 %v703, %v702
      %v728 = vpack.c.bf16 %v705, %v704
      %v729 = vpack.c.bf16 %v707, %v706
      %v730 = vpack.c.bf16 %v709, %v708
      %v731 = vpack.c.bf16 %v711, %v710
      %v732 = vpack.c.bf16 %v713, %v712
      %v733 = vpack.c.bf16 %v715, %v714
      %v734 = vpack.c.bf16 %v717, %v716
      %v735 = vpack.c.bf16 %v719, %v718
      %v752 = vunpack.c.l.b16 %v720
      %v753 = vunpack.c.h.b16 %v720
      %v754 = vunpack.c.l.b16 %v721
      %v755 = vunpack.c.h.b16 %v721
      %v756 = vunpack.c.l.b16 %v722
      %v757 = vunpack.c.h.b16 %v722
      %v758 = vunpack.c.l.b16 %v723
      %v759 = vunpack.c.h.b16 %v723
      %v760 = vunpack.c.l.b16 %v724
      %v761 = vunpack.c.h.b16 %v724
      %v762 = vunpack.c.l.b16 %v725
      %v763 = vunpack.c.h.b16 %v725
      %v764 = vunpack.c.l.b16 %v726
      %v765 = vunpack.c.h.b16 %v726
      %v766 = vunpack.c.l.b16 %v727
      %v767 = vunpack.c.h.b16 %v727
      %v768 = vunpack.c.l.b16 %v728
      %v769 = vunpack.c.h.b16 %v728
      %v770 = vunpack.c.l.b16 %v729
      %v771 = vunpack.c.h.b16 %v729
      %v772 = vunpack.c.l.b16 %v730
      %v773 = vunpack.c.h.b16 %v730
      %v774 = vunpack.c.l.b16 %v731
      %v775 = vunpack.c.h.b16 %v731
      %v776 = vunpack.c.l.b16 %v732
      %v777 = vunpack.c.h.b16 %v732
      %v778 = vunpack.c.l.b16 %v733
      %v779 = vunpack.c.h.b16 %v733
      %v780 = vunpack.c.l.b16 %v734
      %v781 = vunpack.c.h.b16 %v734
      %v782 = vunpack.c.l.b16 %v735
      %v783 = vunpack.c.h.b16 %v735
      %v784 = vpack.c.b16 %v752, %v752
      %v785 = vpack.c.b16 %v753, %v753
      %v786 = vpack.c.b16 %v754, %v754
      %v787 = vpack.c.b16 %v755, %v755
      %v788 = vpack.c.b16 %v756, %v756
      %v789 = vpack.c.b16 %v757, %v757
      %v790 = vpack.c.b16 %v758, %v758
      %v791 = vpack.c.b16 %v759, %v759
      %v792 = vpack.c.b16 %v760, %v760
      %v793 = vpack.c.b16 %v761, %v761
      %v794 = vpack.c.b16 %v762, %v762
      %v795 = vpack.c.b16 %v763, %v763
      %v796 = vpack.c.b16 %v764, %v764
      %v797 = vpack.c.b16 %v765, %v765
      %v798 = vpack.c.b16 %v766, %v766
      %v799 = vpack.c.b16 %v767, %v767
      %v800 = vpack.c.b16 %v768, %v768
      %v801 = vpack.c.b16 %v769, %v769
      %v802 = vpack.c.b16 %v770, %v770
      %v803 = vpack.c.b16 %v771, %v771
      %v804 = vpack.c.b16 %v772, %v772
      %v805 = vpack.c.b16 %v773, %v773
      %v806 = vpack.c.b16 %v774, %v774
      %v807 = vpack.c.b16 %v775, %v775
      %v808 = vpack.c.b16 %v776, %v776
      %v809 = vpack.c.b16 %v777, %v777
      %v810 = vpack.c.b16 %v778, %v778
      %v811 = vpack.c.b16 %v779, %v779
      %v812 = vpack.c.b16 %v780, %v780
      %v813 = vpack.c.b16 %v781, %v781
      %v814 = vpack.c.b16 %v782, %v782
      %v815 = vpack.c.b16 %v783, %v783
      %vm848 = vcmask 11264
      %849 = vst.msk [vmem:[%s223] sm:$0xf] %vm848, %v784
      %850 = vst.msk [vmem:[%s223 + $0x4] sm:$0xf] %vm848, %v785
      %851 = vst.msk [vmem:[%s223 + $0x8] sm:$0xf] %vm848, %v786
      %852 = vst.msk [vmem:[%s223 + $0xc] sm:$0xf] %vm848, %v787
      %853 = vst.msk [vmem:[%s223 + $0x10] sm:$0xf] %vm848, %v788
      %854 = vst.msk [vmem:[%s223 + $0x14] sm:$0xf] %vm848, %v789
      %855 = vst.msk [vmem:[%s223 + $0x18] sm:$0xf] %vm848, %v790
      %856 = vst.msk [vmem:[%s223 + $0x1c] sm:$0xf] %vm848, %v791
      %857 = vst.msk [vmem:[%s223 + $0x20] sm:$0xf] %vm848, %v792
      %858 = vst.msk [vmem:[%s223 + $0x24] sm:$0xf] %vm848, %v793
      %859 = vst.msk [vmem:[%s223 + $0x28] sm:$0xf] %vm848, %v794
      %860 = vst.msk [vmem:[%s223 + $0x2c] sm:$0xf] %vm848, %v795
      %861 = vst.msk [vmem:[%s223 + $0x30] sm:$0xf] %vm848, %v796
      %862 = vst.msk [vmem:[%s223 + $0x34] sm:$0xf] %vm848, %v797
      %863 = vst.msk [vmem:[%s223 + $0x38] sm:$0xf] %vm848, %v798
      %864 = vst.msk [vmem:[%s223 + $0x3c] sm:$0xf] %vm848, %v799
      %865 = vst.msk [vmem:[%s223 + $0x40] sm:$0xf] %vm848, %v800
      %866 = vst.msk [vmem:[%s223 + $0x44] sm:$0xf] %vm848, %v801
      %867 = vst.msk [vmem:[%s223 + $0x48] sm:$0xf] %vm848, %v802
      %868 = vst.msk [vmem:[%s223 + $0x4c] sm:$0xf] %vm848, %v803
      %869 = vst.msk [vmem:[%s223 + $0x50] sm:$0xf] %vm848, %v804
      %870 = vst.msk [vmem:[%s223 + $0x54] sm:$0xf] %vm848, %v805
      %871 = vst.msk [vmem:[%s223 + $0x58] sm:$0xf] %vm848, %v806
      %872 = vst.msk [vmem:[%s223 + $0x5c] sm:$0xf] %vm848, %v807
      %873 = vst.msk [vmem:[%s223 + $0x60] sm:$0xf] %vm848, %v808
      %874 = vst.msk [vmem:[%s223 + $0x64] sm:$0xf] %vm848, %v809
      %875 = vst.msk [vmem:[%s223 + $0x68] sm:$0xf] %vm848, %v810
      %876 = vst.msk [vmem:[%s223 + $0x6c] sm:$0xf] %vm848, %v811
      %877 = vst.msk [vmem:[%s223 + $0x70] sm:$0xf] %vm848, %v812
      %878 = vst.msk [vmem:[%s223 + $0x74] sm:$0xf] %vm848, %v813
      %879 = vst.msk [vmem:[%s223 + $0x78] sm:$0xf] %vm848, %v814
      %880 = vst.msk [vmem:[%s223 + $0x7c] sm:$0xf] %vm848, %v815
      %s881 = smul.u32 32, %s19
      %p882 = scmp.lt.s32.totalorder %s881, 63
      %s883 = scalar_select %p882, %s881, 63
      %p884 = scmp.lt.s32.totalorder %s18, 0
      %s885 = scalar_select %p884, %s18, 0
      %s886 = sadd.s32 %s885, %s883
      %s887 = smul.addr %s886, 4
      %s888 = scalar_lea.vmem %s3, %s887
      // Predicated region
      $region33: #{tpu_custom_call.1} parent=31 // pred_check
        %p889 = pneg %p124
      $region34: #{tpu_custom_call.1} parent=31 // pred_check_branch
        %891 = sbr.rel (%p889) target = $region36
      $region35: #{tpu_custom_call.1} parent=31 // pred_region
        %s892 = smul.u32 32, %s19
      $region36: #{tpu_custom_call.1} parent=31 // pred_fallthru
        _
    $region32: #{tpu_custom_call.1} parent=5 // pred_fallthru
      _
    %p893 = scmp.le.s32.totalorder 2, %s9
    // Predicated region
    $region37: #{tpu_custom_call.1} parent=5 // pred_check
      %p894 = pneg %p893
    $region38: #{tpu_custom_call.1} parent=5 // pred_check_branch
      %896 = sbr.rel (%p894) target = $region40
    $region39: #{tpu_custom_call.1} parent=5 // pred_region
      %s897 = ssub.s32 %s9, 2
      // Predicated region
      $region41: #{tpu_custom_call.1} parent=39 // pred_check
        %p898 = pneg %p130
      $region42: #{tpu_custom_call.1} parent=39 // pred_check_branch
        %900 = sbr.rel (%p898) target = $region44
      $region43: #{tpu_custom_call.1} parent=39 // pred_region
        %s901 = smul.u32 32, %s21
        %p902 = scmp.lt.s32.totalorder %s901, 63
        %s903 = scalar_select %p902, %s901, 63
        %p904 = scmp.lt.s32.totalorder %s20, 0
        %s905 = scalar_select %p904, %s20, 0
        %s906 = sadd.s32 %s905, %s903
        %s907 = smul.addr %s906, 4
        %s908 = scalar_lea.vmem %s3, %s907
      $region44: #{tpu_custom_call.1} parent=39 // pred_fallthru
        _
    $region40: #{tpu_custom_call.1} parent=5 // pred_fallthru
      _
  $region6: #{tpu_custom_call.1} parent=0 // loop_footer
    %s13 = sadd.s32 1, %s9
  $region7: #{tpu_custom_call.1} parent=0 // loop_footer_branch
    %8 = sbr.rel target = $region3
  $region8: #{tpu_custom_call.1} parent=0 // loop_exit
    _

</llo_original>
